<compile_context>
chip_gen: v5e
topology: v5e:2x2
jax: 0.10.0
libtpu: 0.0.40
codegen_flags: <defaults>
</compile_context>

<pallas_src>
import jax
import jax.numpy as jnp
from jax.experimental import pallas as pl
from jax.experimental.pallas import tpu as pltpu

_LANE = 128


def _mlp_kernel(x_ref,
                w1_ref, b1_ref,
                w2_ref, b2_ref,
                w3_ref, b3_ref,
                w4_ref, b4_ref,
                o_ref):
    # Layer 1: Linear -> (Dropout: identity) -> ReLU
    h = x_ref[...].astype(jnp.bfloat16)   # no-op if x is already bf16 (v5e path)
    h = jnp.dot(h, w1_ref[...], preferred_element_type=jnp.float32) + b1_ref[...]
    h = jnp.maximum(h, 0.0).astype(jnp.bfloat16)
    # Layer 2
    h = jnp.dot(h, w2_ref[...], preferred_element_type=jnp.float32) + b2_ref[...]
    h = jnp.maximum(h, 0.0).astype(jnp.bfloat16)
    # Layer 3
    h = jnp.dot(h, w3_ref[...], preferred_element_type=jnp.float32) + b3_ref[...]
    h = jnp.maximum(h, 0.0).astype(jnp.bfloat16)
    # Layer 4 (logits, lane-padded output, no activation)
    o_ref[...] = (jnp.dot(h, w4_ref[...], preferred_element_type=jnp.float32)
                  + b4_ref[...])


def _num_tensorcores():
    """v7x has 2 TensorCores per chip; v5e/v6e have 1."""
    try:
        kind = jax.devices()[0].device_kind.lower()
        if "v7" in kind or "7x" in kind:
            return 2
    except Exception:
        pass
    return 1


def _choose_block_m(B, *, num_cores=1, max_block=512):
    """Pick a row-block size: as large as possible (amortize per-step overhead,
    fill 256-wide MXU rows), preferring sizes that divide B exactly (no batch
    pad) and give a grid length that is a multiple of num_cores (keeps both
    v7x TensorCores busy)."""
    if B <= _LANE:
        return B if B % 8 == 0 else ((B + 7) // 8) * 8
    cands = list(range(max_block, _LANE - 1, -_LANE))  # 512, 384, 256, 128
    for bm in cands:  # exact divisor AND even grid per core count
        if B % bm == 0 and (B // bm) % num_cores == 0:
            return bm
    for bm in cands:  # exact divisor (no batch pad)
        if B % bm == 0:
            return bm
    return _LANE      # fall back: pad the ragged tail


def mlp_forward(x, params, num_label, *, block_m=None):
    """x: [B, input_size] f32 or bf16; params: list of (W [in,out] bf16, b [1,out] f32).
    The last layer's W/b are already lane-padded to a multiple of 128 columns."""
    (w1, b1), (w2, b2), (w3, b3), (w4p, b4p) = params
    B, in_dim = x.shape
    n_out = w4p.shape[1]

    if block_m is None:
        block_m = _choose_block_m(B, num_cores=_num_tensorcores())

    # Only pad the batch if block_m does not divide B (the chooser avoids this
    # whenever possible, so usually no extra HBM copy of x happens here).
    row_pad = (-B) % block_m
    xp = x if row_pad == 0 else jnp.pad(x, ((0, row_pad), (0, 0)))
    Bp = B + row_pad
    grid = (Bp // block_m,)

    def resident(shape):
        # Constant block index => the whole weight/bias stays VMEM-resident
        # across grid steps (fetched once, no re-DMA per batch block).
        return pl.BlockSpec(shape, lambda i: (0, 0))

    flops = 2 * Bp * (w1.shape[0] * w1.shape[1]
                      + w2.shape[0] * w2.shape[1]
                      + w3.shape[0] * w3.shape[1]
                      + w4p.shape[0] * w4p.shape[1])
    bytes_accessed = int(
        xp.size * xp.dtype.itemsize
        + sum(a.size * a.dtype.itemsize
              for a in (w1, b1, w2, b2, w3, b3, w4p, b4p))
        + Bp * n_out * 4)

    out = pl.pallas_call(
        _mlp_kernel,
        out_shape=jax.ShapeDtypeStruct((Bp, n_out), jnp.float32),
        grid=grid,
        in_specs=[
            pl.BlockSpec((block_m, in_dim), lambda i: (i, 0)),  # x row-block
            resident(w1.shape), resident(b1.shape),
            resident(w2.shape), resident(b2.shape),
            resident(w3.shape), resident(b3.shape),
            resident(w4p.shape), resident(b4p.shape),
        ],
        out_specs=pl.BlockSpec((block_m, n_out), lambda i: (i, 0)),
        compiler_params=pltpu.CompilerParams(
            dimension_semantics=("parallel",)),
        cost_estimate=pl.CostEstimate(flops=int(flops),
                                      transcendentals=0,
                                      bytes_accessed=bytes_accessed),
    )(xp, w1, b1, w2, b2, w3, b3, w4p, b4p)

    return out[:B, :num_label]


def init_params(key, input_size, num_label):
    """Deterministic init matching MyModel.init_params:
    xavier_normal_ for weights (stored [in,out], bf16), zeros for biases (f32).
    The final layer's weight/bias are lane-padded once here (zero columns) so
    the kernel's output store is lane-dense and no per-call pad is needed."""
    dims = [input_size, input_size // 2, input_size // 4, input_size // 8, num_label]
    params = []
    for i in range(4):
        fan_in, fan_out = dims[i], dims[i + 1]
        key, sub = jax.random.split(key)
        std = (2.0 / (fan_in + fan_out)) ** 0.5
        w = (std * jax.random.normal(sub, (fan_in, fan_out), dtype=jnp.float32)
             ).astype(jnp.bfloat16)
        b = jnp.zeros((1, fan_out), dtype=jnp.float32)
        if i == 3:  # lane-pad the logits layer to a multiple of 128 columns
            out_pad = (-fan_out) % _LANE
            w = jnp.pad(w, ((0, 0), (0, out_pad)))
            b = jnp.pad(b, ((0, 0), (0, out_pad)))
        params.append((w, b))
    return params


def reference_forward(x, params, num_label):
    """Pure-JAX reference with the same bf16-input / f32-accumulate dots."""
    h = x
    for i, (w, b) in enumerate(params):
        h = jnp.dot(h.astype(jnp.bfloat16), w.astype(jnp.bfloat16),
                    preferred_element_type=jnp.float32) + b
        if i < 3:
            h = jnp.maximum(h, 0.0)
    return h[:, :num_label]


if __name__ == "__main__":
    INPUT_SIZE = 256
    NUM_LABEL = 10
    BATCH = 256   # divisible by 128/256 -> no batch padding; grid=1 (v5e/v6e) or 2 (v7x)

    key = jax.random.PRNGKey(0)
    key_x, key_p = jax.random.split(key)

    x = jax.random.normal(key_x, (BATCH, INPUT_SIZE), dtype=jnp.float32)
    params = init_params(key_p, INPUT_SIZE, NUM_LABEL)

    logits = mlp_forward(x, params, NUM_LABEL)
    jax.block_until_ready(logits)

    # Sanity check against a pure-JAX reference.
    ref = reference_forward(x, params, NUM_LABEL)
    assert logits.shape == (BATCH, NUM_LABEL)
    assert jnp.allclose(logits, ref, atol=1e-2, rtol=1e-2)

    print("KERNEL_OK")
</pallas_src>

<mosaic_0001>
module attributes {stable_mosaic.version = 11 : i64} {
  func.func @_mlp_kernel(%arg0: i32, %arg1: memref<256x256xf32, #tpu.memory_space<vmem>>, %arg2: memref<256x128xbf16, #tpu.memory_space<vmem>>, %arg3: memref<1x128xf32, #tpu.memory_space<vmem>>, %arg4: memref<128x64xbf16, #tpu.memory_space<vmem>>, %arg5: memref<1x64xf32, #tpu.memory_space<vmem>>, %arg6: memref<64x32xbf16, #tpu.memory_space<vmem>>, %arg7: memref<1x32xf32, #tpu.memory_space<vmem>>, %arg8: memref<32x128xbf16, #tpu.memory_space<vmem>>, %arg9: memref<1x128xf32, #tpu.memory_space<vmem>>, %arg10: memref<256x128xf32, #tpu.memory_space<vmem>>) attributes {dimension_semantics = [#tpu.dimension_semantics<parallel>], iteration_bounds = array<i64: 1>, scalar_prefetch = 0 : i64, scratch_operands = 0 : i64, tpu.core_type = #tpu.core_type<tc>, window_params = [{transform_indices = @transform_0, window_bounds = array<i64: 256, 256>}, {pipeline_mode = #tpu.pipeline_mode<synchronous>, transform_indices = @transform_1, window_bounds = array<i64: 256, 128>}, {pipeline_mode = #tpu.pipeline_mode<synchronous>, transform_indices = @transform_2, window_bounds = array<i64: 1, 128>}, {pipeline_mode = #tpu.pipeline_mode<synchronous>, transform_indices = @transform_3, window_bounds = array<i64: 128, 64>}, {pipeline_mode = #tpu.pipeline_mode<synchronous>, transform_indices = @transform_4, window_bounds = array<i64: 1, 64>}, {pipeline_mode = #tpu.pipeline_mode<synchronous>, transform_indices = @transform_5, window_bounds = array<i64: 64, 32>}, {pipeline_mode = #tpu.pipeline_mode<synchronous>, transform_indices = @transform_6, window_bounds = array<i64: 1, 32>}, {pipeline_mode = #tpu.pipeline_mode<synchronous>, transform_indices = @transform_7, window_bounds = array<i64: 32, 128>}, {pipeline_mode = #tpu.pipeline_mode<synchronous>, transform_indices = @transform_8, window_bounds = array<i64: 1, 128>}, {transform_indices = @transform_9, window_bounds = array<i64: 256, 128>}]} {
    %c0 = arith.constant 0 : index
    %c0_0 = arith.constant 0 : index
    %0 = vector.load %arg1[%c0, %c0_0] : memref<256x256xf32, #tpu.memory_space<vmem>>, vector<256x256xf32>
    %1 = arith.truncf %0 : vector<256x256xf32> to vector<256x256xbf16>
    %c0_1 = arith.constant 0 : index
    %c0_2 = arith.constant 0 : index
    %2 = vector.load %arg2[%c0_1, %c0_2] : memref<256x128xbf16, #tpu.memory_space<vmem>>, vector<256x128xbf16>
    %cst = arith.constant dense<0.000000e+00> : vector<256x128xf32>
    %3 = tpu.matmul %1, %2, %cst {dimension_numbers = #tpu.dot_dimension_numbers<[1], [0], [0], [1], [0, 0, 1, 1], [], []>} : vector<256x256xbf16>, vector<256x128xbf16>, vector<256x128xf32> -> vector<256x128xf32>
    %c0_3 = arith.constant 0 : index
    %c0_4 = arith.constant 0 : index
    %4 = vector.load %arg3[%c0_3, %c0_4] : memref<1x128xf32, #tpu.memory_space<vmem>>, vector<1x128xf32>
    %5 = vector.broadcast %4 : vector<1x128xf32> to vector<256x128xf32>
    %6 = arith.addf %3, %5 : vector<256x128xf32>
    %cst_5 = arith.constant 0.000000e+00 : f32
    %7 = vector.broadcast %cst_5 : f32 to vector<256x128xf32>
    %8 = arith.maximumf %6, %7 : vector<256x128xf32>
    %9 = arith.truncf %8 : vector<256x128xf32> to vector<256x128xbf16>
    %c0_6 = arith.constant 0 : index
    %c0_7 = arith.constant 0 : index
    %10 = vector.load %arg4[%c0_6, %c0_7] : memref<128x64xbf16, #tpu.memory_space<vmem>>, vector<128x64xbf16>
    %cst_8 = arith.constant dense<0.000000e+00> : vector<256x64xf32>
    %11 = tpu.matmul %9, %10, %cst_8 {dimension_numbers = #tpu.dot_dimension_numbers<[1], [0], [0], [1], [0, 0, 1, 1], [], []>} : vector<256x128xbf16>, vector<128x64xbf16>, vector<256x64xf32> -> vector<256x64xf32>
    %c0_9 = arith.constant 0 : index
    %c0_10 = arith.constant 0 : index
    %12 = vector.load %arg5[%c0_9, %c0_10] : memref<1x64xf32, #tpu.memory_space<vmem>>, vector<1x64xf32>
    %13 = vector.broadcast %12 : vector<1x64xf32> to vector<256x64xf32>
    %14 = arith.addf %11, %13 : vector<256x64xf32>
    %cst_11 = arith.constant 0.000000e+00 : f32
    %15 = vector.broadcast %cst_11 : f32 to vector<256x64xf32>
    %16 = arith.maximumf %14, %15 : vector<256x64xf32>
    %17 = arith.truncf %16 : vector<256x64xf32> to vector<256x64xbf16>
    %c0_12 = arith.constant 0 : index
    %c0_13 = arith.constant 0 : index
    %18 = vector.load %arg6[%c0_12, %c0_13] : memref<64x32xbf16, #tpu.memory_space<vmem>>, vector<64x32xbf16>
    %cst_14 = arith.constant dense<0.000000e+00> : vector<256x32xf32>
    %19 = tpu.matmul %17, %18, %cst_14 {dimension_numbers = #tpu.dot_dimension_numbers<[1], [0], [0], [1], [0, 0, 1, 1], [], []>} : vector<256x64xbf16>, vector<64x32xbf16>, vector<256x32xf32> -> vector<256x32xf32>
    %c0_15 = arith.constant 0 : index
    %c0_16 = arith.constant 0 : index
    %20 = vector.load %arg7[%c0_15, %c0_16] : memref<1x32xf32, #tpu.memory_space<vmem>>, vector<1x32xf32>
    %21 = vector.broadcast %20 : vector<1x32xf32> to vector<256x32xf32>
    %22 = arith.addf %19, %21 : vector<256x32xf32>
    %cst_17 = arith.constant 0.000000e+00 : f32
    %23 = vector.broadcast %cst_17 : f32 to vector<256x32xf32>
    %24 = arith.maximumf %22, %23 : vector<256x32xf32>
    %25 = arith.truncf %24 : vector<256x32xf32> to vector<256x32xbf16>
    %c0_18 = arith.constant 0 : index
    %c0_19 = arith.constant 0 : index
    %26 = vector.load %arg8[%c0_18, %c0_19] : memref<32x128xbf16, #tpu.memory_space<vmem>>, vector<32x128xbf16>
    %cst_20 = arith.constant dense<0.000000e+00> : vector<256x128xf32>
    %27 = tpu.matmul %25, %26, %cst_20 {dimension_numbers = #tpu.dot_dimension_numbers<[1], [0], [0], [1], [0, 0, 1, 1], [], []>} : vector<256x32xbf16>, vector<32x128xbf16>, vector<256x128xf32> -> vector<256x128xf32>
    %c0_21 = arith.constant 0 : index
    %c0_22 = arith.constant 0 : index
    %28 = vector.load %arg9[%c0_21, %c0_22] : memref<1x128xf32, #tpu.memory_space<vmem>>, vector<1x128xf32>
    %29 = vector.broadcast %28 : vector<1x128xf32> to vector<256x128xf32>
    %30 = arith.addf %27, %29 : vector<256x128xf32>
    %c0_23 = arith.constant 0 : index
    %c0_24 = arith.constant 0 : index
    %31 = vector.load %arg10[%c0_23, %c0_24] : memref<256x128xf32, #tpu.memory_space<vmem>>, vector<256x128xf32>
    tpu.vector_store %arg10[%c0_23, %c0_24], %30 {strides = array<i32>} : memref<256x128xf32, #tpu.memory_space<vmem>>, vector<256x128xf32>,
    return
  }
  func.func @transform_0(%arg0: i32) -> (i32, i32) {
    %c0_i32 = arith.constant 0 : i32
    %c0_i32_0 = arith.constant 0 : i32
    return %arg0, %c0_i32 : i32, i32
  }
  func.func @transform_1(%arg0: i32) -> (i32, i32) {
    %c0_i32 = arith.constant 0 : i32
    %c0_i32_0 = arith.constant 0 : i32
    %c0_i32_1 = arith.constant 0 : i32
    return %c0_i32, %c0_i32_0 : i32, i32
  }
  func.func @transform_2(%arg0: i32) -> (i32, i32) {
    %c0_i32 = arith.constant 0 : i32
    %c0_i32_0 = arith.constant 0 : i32
    %c0_i32_1 = arith.constant 0 : i32
    return %c0_i32, %c0_i32_0 : i32, i32
  }
  func.func @transform_3(%arg0: i32) -> (i32, i32) {
    %c0_i32 = arith.constant 0 : i32
    %c0_i32_0 = arith.constant 0 : i32
    %c0_i32_1 = arith.constant 0 : i32
    return %c0_i32, %c0_i32_0 : i32, i32
  }
  func.func @transform_4(%arg0: i32) -> (i32, i32) {
    %c0_i32 = arith.constant 0 : i32
    %c0_i32_0 = arith.constant 0 : i32
    %c0_i32_1 = arith.constant 0 : i32
    return %c0_i32, %c0_i32_0 : i32, i32
  }
  func.func @transform_5(%arg0: i32) -> (i32, i32) {
    %c0_i32 = arith.constant 0 : i32
    %c0_i32_0 = arith.constant 0 : i32
    %c0_i32_1 = arith.constant 0 : i32
    return %c0_i32, %c0_i32_0 : i32, i32
  }
  func.func @transform_6(%arg0: i32) -> (i32, i32) {
    %c0_i32 = arith.constant 0 : i32
    %c0_i32_0 = arith.constant 0 : i32
    %c0_i32_1 = arith.constant 0 : i32
    return %c0_i32, %c0_i32_0 : i32, i32
  }
  func.func @transform_7(%arg0: i32) -> (i32, i32) {
    %c0_i32 = arith.constant 0 : i32
    %c0_i32_0 = arith.constant 0 : i32
    %c0_i32_1 = arith.constant 0 : i32
    return %c0_i32, %c0_i32_0 : i32, i32
  }
  func.func @transform_8(%arg0: i32) -> (i32, i32) {
    %c0_i32 = arith.constant 0 : i32
    %c0_i32_0 = arith.constant 0 : i32
    %c0_i32_1 = arith.constant 0 : i32
    return %c0_i32, %c0_i32_0 : i32, i32
  }
  func.func @transform_9(%arg0: i32) -> (i32, i32) {
    %c0_i32 = arith.constant 0 : i32
    %c0_i32_0 = arith.constant 0 : i32
    return %arg0, %c0_i32 : i32, i32
  }
}

</mosaic_0001>

<llo_original>
// kernel: tpu_custom_call.1
$region0: #{tpu_custom_call.1}
  #allocation0 [shape = 'u32[]', space=smem, size = 0x4, offset = 0x4, fixed_abs, tag = 'smem constant byte address 0x4 - core index']
  #allocation1 [shape = 'u32[72,128]{1,0:T(1,128)}', space=vmem, size = 0x9000, scoped, tag = 'internal scratch']
  %s0 = inlined_call_operand.hbm [shape: f32[256,256], index: 0, kind: input, shape index: {}]
  %s1 = inlined_call_operand.vmem [shape: bf16[256,128], index: 1, kind: input, shape index: {}]
  %s2 = inlined_call_operand.vmem [shape: f32[1,128], index: 2, kind: input, shape index: {}]
  %s3 = inlined_call_operand.vmem [shape: bf16[128,64], index: 3, kind: input, shape index: {}]
  %s4 = inlined_call_operand.vmem [shape: f32[1,64], index: 4, kind: input, shape index: {}]
  %s5 = inlined_call_operand.vmem [shape: bf16[64,32], index: 5, kind: input, shape index: {}]
  %s6 = inlined_call_operand.vmem [shape: f32[1,32], index: 6, kind: input, shape index: {}]
  %s7 = inlined_call_operand.vmem [shape: bf16[32,128], index: 7, kind: input, shape index: {}]
  %s8 = inlined_call_operand.vmem [shape: f32[1,128], index: 8, kind: input, shape index: {}]
  %s9 = inlined_call_operand.hbm [shape: f32[256,128], index: 9, kind: output, shape index: {}]
  %s10 = sld [smem:[#allocation0]]
  $region50: #{tpu_custom_call.1} parent=0
    _
  %s12 = ssub.s32 1, %s10
  %s13 = scalar_select 0, %s12, %s10
  $region1: #{tpu_custom_call.1} parent=0
    #allocation2 [shape = 'u8[262144]{0}', space=vmem, size = 0x40000, scoped, tag = 'input window, operand 0, single buffered']
    #allocation3 [shape = 's32[1]{0}', space=sflag, size = 0x4, scoped, tag = 'scoped memory for tpu_custom_call.1']
    #allocation4 [shape = 's32[1]{0}', space=sflag, size = 0x4, scoped, tag = 'scoped memory for tpu_custom_call.1']
    #allocation5 [shape = 'u8[131072]{0}', space=vmem, size = 0x20000, scoped, tag = 'output window, operand 0, single buffered']
    %14 = vsyncpa [#allocation3], 0
    %15 = vsyncpa [#allocation4], 0
    // Predicated region
    $region2: #{tpu_custom_call.1} parent=1 // pred_check
      _
    $region3: #{tpu_custom_call.1} parent=1 // pred_check_branch
      %17 = sbr.rel (0) target = $region5
    $region4: #{tpu_custom_call.1} parent=1 // pred_region
      %19 = vsyncadd [#allocation3], 0
      %s20 = sshll.u32 %s0, 4
      %s21 = int_to_ptr.hbm [resolvable:$true] %s20
      %s22 = sshll.u32 [#allocation2], 4
      %s23 = int_to_ptr.vmem [resolvable:$true] %s22
      %28 = dma.hbm_to_vmem [thread:$0]  %s21, 8192, %s23, [#allocation3], 256, 256, 16
    $region5: #{tpu_custom_call.1} parent=1 // pred_fallthru
      _
    // Predicated region
    $region6: #{tpu_custom_call.1} parent=1 // pred_check
      _
    $region7: #{tpu_custom_call.1} parent=1 // pred_check_branch
      %30 = sbr.rel (0) target = $region9
    $region8: #{tpu_custom_call.1} parent=1 // pred_region
      _
    $region9: #{tpu_custom_call.1} parent=1 // pred_fallthru
      _
    // Predicated region
    $region10: #{tpu_custom_call.1} parent=1 // pred_check
      _
    $region11: #{tpu_custom_call.1} parent=1 // pred_check_branch
      %32 = sbr.rel (0) target = $region13
    $region12: #{tpu_custom_call.1} parent=1 // pred_region
      _
    $region13: #{tpu_custom_call.1} parent=1 // pred_fallthru
      _
    // Predicated region
    $region14: #{tpu_custom_call.1} parent=1 // pred_check
      _
    $region15: #{tpu_custom_call.1} parent=1 // pred_check_branch
      %34 = sbr.rel (0) target = $region17
    $region16: #{tpu_custom_call.1} parent=1 // pred_region
      _
    $region17: #{tpu_custom_call.1} parent=1 // pred_fallthru
      _
    // Predicated region
    $region18: #{tpu_custom_call.1} parent=1 // pred_check
      _
    $region19: #{tpu_custom_call.1} parent=1 // pred_check_branch
      %36 = sbr.rel (0) target = $region21
    $region20: #{tpu_custom_call.1} parent=1 // pred_region
      _
    $region21: #{tpu_custom_call.1} parent=1 // pred_fallthru
      _
    // Predicated region
    $region22: #{tpu_custom_call.1} parent=1 // pred_check
      _
    $region23: #{tpu_custom_call.1} parent=1 // pred_check_branch
      %38 = sbr.rel (0) target = $region25
    $region24: #{tpu_custom_call.1} parent=1 // pred_region
      _
    $region25: #{tpu_custom_call.1} parent=1 // pred_fallthru
      _
    // Predicated region
    $region26: #{tpu_custom_call.1} parent=1 // pred_check
      _
    $region27: #{tpu_custom_call.1} parent=1 // pred_check_branch
      %40 = sbr.rel (0) target = $region29
    $region28: #{tpu_custom_call.1} parent=1 // pred_region
      _
    $region29: #{tpu_custom_call.1} parent=1 // pred_fallthru
      _
    // Predicated region
    $region30: #{tpu_custom_call.1} parent=1 // pred_check
      _
    $region31: #{tpu_custom_call.1} parent=1 // pred_check_branch
      %42 = sbr.rel (0) target = $region33
    $region32: #{tpu_custom_call.1} parent=1 // pred_region
      _
    $region33: #{tpu_custom_call.1} parent=1 // pred_fallthru
      _
    // Predicated region
    $region34: #{tpu_custom_call.1} parent=1 // pred_check
      _
    $region35: #{tpu_custom_call.1} parent=1 // pred_check_branch
      %44 = sbr.rel (0) target = $region37
    $region36: #{tpu_custom_call.1} parent=1 // pred_region
      _
    $region37: #{tpu_custom_call.1} parent=1 // pred_fallthru
      _
    // Predicated region
    $region38: #{tpu_custom_call.1} parent=1 // pred_check
      _
    $region39: #{tpu_custom_call.1} parent=1 // pred_check_branch
      %46 = sbr.rel (0) target = $region41
    $region40: #{tpu_custom_call.1} parent=1 // pred_region
      %48 = dma.done [#allocation3], 8192
    $region41: #{tpu_custom_call.1} parent=1 // pred_fallthru
      _
    %v50 = vld [vmem:[#allocation2] sm:$0xff]
    %v51 = vld [vmem:[#allocation2 + $0x8] sm:$0xff]
    %v52 = vld [vmem:[#allocation2 + $0x10] sm:$0xff]
    %v53 = vld [vmem:[#allocation2 + $0x18] sm:$0xff]
    %v54 = vld [vmem:[#allocation2 + $0x20] sm:$0xff]
    %v55 = vld [vmem:[#allocation2 + $0x28] sm:$0xff]
    %v56 = vld [vmem:[#allocation2 + $0x30] sm:$0xff]
    %v57 = vld [vmem:[#allocation2 + $0x38] sm:$0xff]
    %v58 = vld [vmem:[#allocation2 + $0x40] sm:$0xff]
    %v59 = vld [vmem:[#allocation2 + $0x48] sm:$0xff]
    %v60 = vld [vmem:[#allocation2 + $0x50] sm:$0xff]
    %v61 = vld [vmem:[#allocation2 + $0x58] sm:$0xff]
    %v62 = vld [vmem:[#allocation2 + $0x60] sm:$0xff]
    %v63 = vld [vmem:[#allocation2 + $0x68] sm:$0xff]
    %v64 = vld [vmem:[#allocation2 + $0x70] sm:$0xff]
    %v65 = vld [vmem:[#allocation2 + $0x78] sm:$0xff]
    %v66 = vld [vmem:[#allocation2 + $0x80] sm:$0xff]
    %v67 = vld [vmem:[#allocation2 + $0x88] sm:$0xff]
    %v68 = vld [vmem:[#allocation2 + $0x90] sm:$0xff]
    %v69 = vld [vmem:[#allocation2 + $0x98] sm:$0xff]
    %v70 = vld [vmem:[#allocation2 + $0xa0] sm:$0xff]
    %v71 = vld [vmem:[#allocation2 + $0xa8] sm:$0xff]
    %v72 = vld [vmem:[#allocation2 + $0xb0] sm:$0xff]
    %v73 = vld [vmem:[#allocation2 + $0xb8] sm:$0xff]
    %v74 = vld [vmem:[#allocation2 + $0xc0] sm:$0xff]
    %v75 = vld [vmem:[#allocation2 + $0xc8] sm:$0xff]
    %v76 = vld [vmem:[#allocation2 + $0xd0] sm:$0xff]
    %v77 = vld [vmem:[#allocation2 + $0xd8] sm:$0xff]
    %v78 = vld [vmem:[#allocation2 + $0xe0] sm:$0xff]
    %v79 = vld [vmem:[#allocation2 + $0xe8] sm:$0xff]
    %v80 = vld [vmem:[#allocation2 + $0xf0] sm:$0xff]
    %v81 = vld [vmem:[#allocation2 + $0xf8] sm:$0xff]
    %v82 = vld [vmem:[#allocation2 + $0x100] sm:$0xff]
    %v83 = vld [vmem:[#allocation2 + $0x108] sm:$0xff]
    %v84 = vld [vmem:[#allocation2 + $0x110] sm:$0xff]
    %v85 = vld [vmem:[#allocation2 + $0x118] sm:$0xff]
    %v86 = vld [vmem:[#allocation2 + $0x120] sm:$0xff]
    %v87 = vld [vmem:[#allocation2 + $0x128] sm:$0xff]
    %v88 = vld [vmem:[#allocation2 + $0x130] sm:$0xff]
    %v89 = vld [vmem:[#allocation2 + $0x138] sm:$0xff]
    %v90 = vld [vmem:[#allocation2 + $0x140] sm:$0xff]
    %v91 = vld [vmem:[#allocation2 + $0x148] sm:$0xff]
    %v92 = vld [vmem:[#allocation2 + $0x150] sm:$0xff]
    %v93 = vld [vmem:[#allocation2 + $0x158] sm:$0xff]
    %v94 = vld [vmem:[#allocation2 + $0x160] sm:$0xff]
    %v95 = vld [vmem:[#allocation2 + $0x168] sm:$0xff]
    %v96 = vld [vmem:[#allocation2 + $0x170] sm:$0xff]
    %v97 = vld [vmem:[#allocation2 + $0x178] sm:$0xff]
    %v98 = vld [vmem:[#allocation2 + $0x180] sm:$0xff]
    %v99 = vld [vmem:[#allocation2 + $0x188] sm:$0xff]
    %v100 = vld [vmem:[#allocation2 + $0x190] sm:$0xff]
    %v101 = vld [vmem:[#allocation2 + $0x198] sm:$0xff]
    %v102 = vld [vmem:[#allocation2 + $0x1a0] sm:$0xff]
    %v103 = vld [vmem:[#allocation2 + $0x1a8] sm:$0xff]
    %v104 = vld [vmem:[#allocation2 + $0x1b0] sm:$0xff]
    %v105 = vld [vmem:[#allocation2 + $0x1b8] sm:$0xff]
    %v106 = vld [vmem:[#allocation2 + $0x1c0] sm:$0xff]
    %v107 = vld [vmem:[#allocation2 + $0x1c8] sm:$0xff]
    %v108 = vld [vmem:[#allocation2 + $0x1d0] sm:$0xff]
    %v109 = vld [vmem:[#allocation2 + $0x1d8] sm:$0xff]
    %v110 = vld [vmem:[#allocation2 + $0x1e0] sm:$0xff]
    %v111 = vld [vmem:[#allocation2 + $0x1e8] sm:$0xff]
    %v112 = vld [vmem:[#allocation2 + $0x1f0] sm:$0xff]
    %v113 = vld [vmem:[#allocation2 + $0x1f8] sm:$0xff]
    %v114 = vpack.c.bf16 %v52, %v50
    %v115 = vpack.c.bf16 %v53, %v51
    %v116 = vpack.c.bf16 %v56, %v54
    %v117 = vpack.c.bf16 %v57, %v55
    %v118 = vpack.c.bf16 %v60, %v58
    %v119 = vpack.c.bf16 %v61, %v59
    %v120 = vpack.c.bf16 %v64, %v62
    %v121 = vpack.c.bf16 %v65, %v63
    %v122 = vpack.c.bf16 %v68, %v66
    %v123 = vpack.c.bf16 %v69, %v67
    %v124 = vpack.c.bf16 %v72, %v70
    %v125 = vpack.c.bf16 %v73, %v71
    %v126 = vpack.c.bf16 %v76, %v74
    %v127 = vpack.c.bf16 %v77, %v75
    %v128 = vpack.c.bf16 %v80, %v78
    %v129 = vpack.c.bf16 %v81, %v79
    %v130 = vpack.c.bf16 %v84, %v82
    %v131 = vpack.c.bf16 %v85, %v83
    %v132 = vpack.c.bf16 %v88, %v86
    %v133 = vpack.c.bf16 %v89, %v87
    %v134 = vpack.c.bf16 %v92, %v90
    %v135 = vpack.c.bf16 %v93, %v91
    %v136 = vpack.c.bf16 %v96, %v94
    %v137 = vpack.c.bf16 %v97, %v95
    %v138 = vpack.c.bf16 %v100, %v98
    %v139 = vpack.c.bf16 %v101, %v99
    %v140 = vpack.c.bf16 %v104, %v102
    %v141 = vpack.c.bf16 %v105, %v103
    %v142 = vpack.c.bf16 %v108, %v106
    %v143 = vpack.c.bf16 %v109, %v107
    %v144 = vpack.c.bf16 %v112, %v110
    %v145 = vpack.c.bf16 %v113, %v111
    %v146 = vld [vmem:[%s1] sm:$0xf]
    %v147 = vld [vmem:[%s1 + $0x4] sm:$0xf]
    %v148 = vld [vmem:[%s1 + $0x8] sm:$0xf]
    %v149 = vld [vmem:[%s1 + $0xc] sm:$0xf]
    %v150 = vld [vmem:[%s1 + $0x10] sm:$0xf]
    %v151 = vld [vmem:[%s1 + $0x14] sm:$0xf]
    %v152 = vld [vmem:[%s1 + $0x18] sm:$0xf]
    %v153 = vld [vmem:[%s1 + $0x1c] sm:$0xf]
    %v154 = vld [vmem:[%s1 + $0x20] sm:$0xf]
    %v155 = vld [vmem:[%s1 + $0x24] sm:$0xf]
    %v156 = vld [vmem:[%s1 + $0x28] sm:$0xf]
    %v157 = vld [vmem:[%s1 + $0x2c] sm:$0xf]
    %v158 = vld [vmem:[%s1 + $0x30] sm:$0xf]
    %v159 = vld [vmem:[%s1 + $0x34] sm:$0xf]
    %v160 = vld [vmem:[%s1 + $0x38] sm:$0xf]
    %v161 = vld [vmem:[%s1 + $0x3c] sm:$0xf]
    %v162 = vld [vmem:[%s1 + $0x40] sm:$0xf]
    %v163 = vld [vmem:[%s1 + $0x44] sm:$0xf]
    %v164 = vld [vmem:[%s1 + $0x48] sm:$0xf]
    %v165 = vld [vmem:[%s1 + $0x4c] sm:$0xf]
    %v166 = vld [vmem:[%s1 + $0x50] sm:$0xf]
    %v167 = vld [vmem:[%s1 + $0x54] sm:$0xf]
    %v168 = vld [vmem:[%s1 + $0x58] sm:$0xf]
    %v169 = vld [vmem:[%s1 + $0x5c] sm:$0xf]
    %v170 = vld [vmem:[%s1 + $0x60] sm:$0xf]
    %v171 = vld [vmem:[%s1 + $0x64] sm:$0xf]
    %v172 = vld [vmem:[%s1 + $0x68] sm:$0xf]
    %v173 = vld [vmem:[%s1 + $0x6c] sm:$0xf]
    %v174 = vld [vmem:[%s1 + $0x70] sm:$0xf]
    %v175 = vld [vmem:[%s1 + $0x74] sm:$0xf]
    %v176 = vld [vmem:[%s1 + $0x78] sm:$0xf]
    %v177 = vld [vmem:[%s1 + $0x7c] sm:$0xf]
    %v178 = vld [vmem:[%s2] sm:$0x1]
    %v180 = vperm.slane %v178, 0
    %v214 = vunpack.c.l.b16 %v146
    %v215 = vunpack.c.l.b16 %v147
    %v216 = vunpack.c.l.b16 %v148
    %v217 = vunpack.c.l.b16 %v149
    %v218 = vunpack.c.l.b16 %v150
    %v219 = vunpack.c.l.b16 %v151
    %v220 = vunpack.c.l.b16 %v152
    %v221 = vunpack.c.l.b16 %v153
    %v222 = vunpack.c.l.b16 %v154
    %v223 = vunpack.c.l.b16 %v155
    %v224 = vunpack.c.l.b16 %v156
    %v225 = vunpack.c.l.b16 %v157
    %v226 = vunpack.c.l.b16 %v158
    %v227 = vunpack.c.l.b16 %v159
    %v228 = vunpack.c.l.b16 %v160
    %v229 = vunpack.c.l.b16 %v161
    %v230 = vunpack.c.l.b16 %v162
    %v231 = vunpack.c.l.b16 %v163
    %v232 = vunpack.c.l.b16 %v164
    %v233 = vunpack.c.l.b16 %v165
    %v234 = vunpack.c.l.b16 %v166
    %v235 = vunpack.c.l.b16 %v167
    %v236 = vunpack.c.l.b16 %v168
    %v237 = vunpack.c.l.b16 %v169
    %v238 = vunpack.c.l.b16 %v170
    %v239 = vunpack.c.l.b16 %v171
    %v240 = vunpack.c.l.b16 %v172
    %v241 = vunpack.c.l.b16 %v173
    %v242 = vunpack.c.l.b16 %v174
    %v243 = vunpack.c.l.b16 %v175
    %v244 = vunpack.c.l.b16 %v176
    %v245 = vunpack.c.l.b16 %v177
    %v246 = vpack.c.b16 %v215, %v214
    %v247 = vpack.c.b16 %v217, %v216
    %v248 = vpack.c.b16 %v219, %v218
    %v249 = vpack.c.b16 %v221, %v220
    %v250 = vpack.c.b16 %v223, %v222
    %v251 = vpack.c.b16 %v225, %v224
    %v252 = vpack.c.b16 %v227, %v226
    %v253 = vpack.c.b16 %v229, %v228
    %v254 = vpack.c.b16 %v231, %v230
    %v255 = vpack.c.b16 %v233, %v232
    %v256 = vpack.c.b16 %v235, %v234
    %v257 = vpack.c.b16 %v237, %v236
    %v258 = vpack.c.b16 %v239, %v238
    %v259 = vpack.c.b16 %v241, %v240
    %v260 = vpack.c.b16 %v243, %v242
    %v261 = vpack.c.b16 %v245, %v244
    %278 = vmatpush.bf16.msra.mxu0 %v253
    %279 = vmatpush.bf16.msra.mxu0 %v252
    %280 = vmatpush.bf16.msra.mxu0 %v251
    %281 = vmatpush.bf16.msra.mxu0 %v250
    %282 = vmatpush.bf16.msra.mxu0 %v249
    %283 = vmatpush.bf16.msra.mxu0 %v248
    %284 = vmatpush.bf16.msra.mxu0 %v247
    %285 = vmatpush.bf16.msra.mxu0 %v246
    %286 = vmatmul.bf16.gmra.mxu0 %v114
    %v287 = vpop.f32.mrf.mxu0
    %v288 = vadd.f32 %v180, %v287
    %v289 = vpop.f32.mrf.mxu0
    %v290 = vadd.f32 %v180, %v289
    %291 = vmatmul.bf16.gmra.mxu0 %v116
    %v292 = vpop.f32.mrf.mxu0
    %v293 = vadd.f32 %v180, %v292
    %v294 = vpop.f32.mrf.mxu0
    %v295 = vadd.f32 %v180, %v294
    %296 = vmatmul.bf16.gmra.mxu0 %v118
    %v297 = vpop.f32.mrf.mxu0
    %v298 = vadd.f32 %v180, %v297
    %v299 = vpop.f32.mrf.mxu0
    %v300 = vadd.f32 %v180, %v299
    %301 = vmatmul.bf16.gmra.mxu0 %v120
    %v302 = vpop.f32.mrf.mxu0
    %v303 = vadd.f32 %v180, %v302
    %v304 = vpop.f32.mrf.mxu0
    %v305 = vadd.f32 %v180, %v304
    %306 = vmatmul.bf16.gmra.mxu0 %v122
    %v307 = vpop.f32.mrf.mxu0
    %v308 = vadd.f32 %v180, %v307
    %v309 = vpop.f32.mrf.mxu0
    %v310 = vadd.f32 %v180, %v309
    %311 = vmatmul.bf16.gmra.mxu0 %v124
    %v312 = vpop.f32.mrf.mxu0
    %v313 = vadd.f32 %v180, %v312
    %v314 = vpop.f32.mrf.mxu0
    %v315 = vadd.f32 %v180, %v314
    %316 = vmatmul.bf16.gmra.mxu0 %v126
    %v317 = vpop.f32.mrf.mxu0
    %v318 = vadd.f32 %v180, %v317
    %v319 = vpop.f32.mrf.mxu0
    %v320 = vadd.f32 %v180, %v319
    %321 = vmatmul.bf16.gmra.mxu0 %v128
    %v322 = vpop.f32.mrf.mxu0
    %v323 = vadd.f32 %v180, %v322
    %v324 = vpop.f32.mrf.mxu0
    %v325 = vadd.f32 %v180, %v324
    %326 = vmatmul.bf16.gmra.mxu0 %v130
    %v327 = vpop.f32.mrf.mxu0
    %v328 = vadd.f32 %v180, %v327
    %v329 = vpop.f32.mrf.mxu0
    %v330 = vadd.f32 %v180, %v329
    %331 = vmatmul.bf16.gmra.mxu0 %v132
    %v332 = vpop.f32.mrf.mxu0
    %v333 = vadd.f32 %v180, %v332
    %v334 = vpop.f32.mrf.mxu0
    %v335 = vadd.f32 %v180, %v334
    %336 = vmatmul.bf16.gmra.mxu0 %v134
    %v337 = vpop.f32.mrf.mxu0
    %v338 = vadd.f32 %v180, %v337
    %v339 = vpop.f32.mrf.mxu0
    %v340 = vadd.f32 %v180, %v339
    %341 = vmatmul.bf16.gmra.mxu0 %v136
    %v342 = vpop.f32.mrf.mxu0
    %v343 = vadd.f32 %v180, %v342
    %v344 = vpop.f32.mrf.mxu0
    %v345 = vadd.f32 %v180, %v344
    %346 = vmatmul.bf16.gmra.mxu0 %v138
    %v347 = vpop.f32.mrf.mxu0
    %v348 = vadd.f32 %v180, %v347
    %v349 = vpop.f32.mrf.mxu0
    %v350 = vadd.f32 %v180, %v349
    %351 = vmatmul.bf16.gmra.mxu0 %v140
    %v352 = vpop.f32.mrf.mxu0
    %v353 = vadd.f32 %v180, %v352
    %v354 = vpop.f32.mrf.mxu0
    %v355 = vadd.f32 %v180, %v354
    %356 = vmatmul.bf16.gmra.mxu0 %v142
    %v357 = vpop.f32.mrf.mxu0
    %v358 = vadd.f32 %v180, %v357
    %v359 = vpop.f32.mrf.mxu0
    %v360 = vadd.f32 %v180, %v359
    %361 = vmatmul.bf16.gmra.mxu0 %v144
    %v362 = vpop.f32.mrf.mxu0
    %v363 = vadd.f32 %v180, %v362
    %v364 = vpop.f32.mrf.mxu0
    %v365 = vadd.f32 %v180, %v364
    %366 = vdwg.mxu0
    %367 = vmatpush.bf16.msra.mxu0 %v261
    %368 = vmatpush.bf16.msra.mxu0 %v260
    %369 = vmatpush.bf16.msra.mxu0 %v259
    %370 = vmatpush.bf16.msra.mxu0 %v258
    %371 = vmatpush.bf16.msra.mxu0 %v257
    %372 = vmatpush.bf16.msra.mxu0 %v256
    %373 = vmatpush.bf16.msra.mxu0 %v255
    %374 = vmatpush.bf16.msra.mxu0 %v254
    %375 = vmatmul.bf16.gmra.mxu0 %v115
    %v376 = vpop.f32.mrf.mxu0
    %v377 = vadd.f32 %v288, %v376
    %v378 = vpop.f32.mrf.mxu0
    %v379 = vadd.f32 %v290, %v378
    %380 = vmatmul.bf16.gmra.mxu0 %v117
    %v381 = vpop.f32.mrf.mxu0
    %v382 = vadd.f32 %v293, %v381
    %v383 = vpop.f32.mrf.mxu0
    %v384 = vadd.f32 %v295, %v383
    %385 = vmatmul.bf16.gmra.mxu0 %v119
    %v386 = vpop.f32.mrf.mxu0
    %v387 = vadd.f32 %v298, %v386
    %v388 = vpop.f32.mrf.mxu0
    %v389 = vadd.f32 %v300, %v388
    %390 = vmatmul.bf16.gmra.mxu0 %v121
    %v391 = vpop.f32.mrf.mxu0
    %v392 = vadd.f32 %v303, %v391
    %v393 = vpop.f32.mrf.mxu0
    %v394 = vadd.f32 %v305, %v393
    %395 = vmatmul.bf16.gmra.mxu0 %v123
    %v396 = vpop.f32.mrf.mxu0
    %v397 = vadd.f32 %v308, %v396
    %v398 = vpop.f32.mrf.mxu0
    %v399 = vadd.f32 %v310, %v398
    %400 = vmatmul.bf16.gmra.mxu0 %v125
    %v401 = vpop.f32.mrf.mxu0
    %v402 = vadd.f32 %v313, %v401
    %v403 = vpop.f32.mrf.mxu0
    %v404 = vadd.f32 %v315, %v403
    %405 = vmatmul.bf16.gmra.mxu0 %v127
    %v406 = vpop.f32.mrf.mxu0
    %v407 = vadd.f32 %v318, %v406
    %v408 = vpop.f32.mrf.mxu0
    %v409 = vadd.f32 %v320, %v408
    %410 = vmatmul.bf16.gmra.mxu0 %v129
    %v411 = vpop.f32.mrf.mxu0
    %v412 = vadd.f32 %v323, %v411
    %v413 = vpop.f32.mrf.mxu0
    %v414 = vadd.f32 %v325, %v413
    %415 = vmatmul.bf16.gmra.mxu0 %v131
    %v416 = vpop.f32.mrf.mxu0
    %v417 = vadd.f32 %v328, %v416
    %v418 = vpop.f32.mrf.mxu0
    %v419 = vadd.f32 %v330, %v418
    %420 = vmatmul.bf16.gmra.mxu0 %v133
    %v421 = vpop.f32.mrf.mxu0
    %v422 = vadd.f32 %v333, %v421
    %v423 = vpop.f32.mrf.mxu0
    %v424 = vadd.f32 %v335, %v423
    %425 = vmatmul.bf16.gmra.mxu0 %v135
    %v426 = vpop.f32.mrf.mxu0
    %v427 = vadd.f32 %v338, %v426
    %v428 = vpop.f32.mrf.mxu0
    %v429 = vadd.f32 %v340, %v428
    %430 = vmatmul.bf16.gmra.mxu0 %v137
    %v431 = vpop.f32.mrf.mxu0
    %v432 = vadd.f32 %v343, %v431
    %v433 = vpop.f32.mrf.mxu0
    %v434 = vadd.f32 %v345, %v433
    %435 = vmatmul.bf16.gmra.mxu0 %v139
    %v436 = vpop.f32.mrf.mxu0
    %v437 = vadd.f32 %v348, %v436
    %v438 = vpop.f32.mrf.mxu0
    %v439 = vadd.f32 %v350, %v438
    %440 = vmatmul.bf16.gmra.mxu0 %v141
    %v441 = vpop.f32.mrf.mxu0
    %v442 = vadd.f32 %v353, %v441
    %v443 = vpop.f32.mrf.mxu0
    %v444 = vadd.f32 %v355, %v443
    %445 = vmatmul.bf16.gmra.mxu0 %v143
    %v446 = vpop.f32.mrf.mxu0
    %v447 = vadd.f32 %v358, %v446
    %v448 = vpop.f32.mrf.mxu0
    %v449 = vadd.f32 %v360, %v448
    %450 = vmatmul.bf16.gmra.mxu0 %v145
    %v451 = vpop.f32.mrf.mxu0
    %v452 = vadd.f32 %v363, %v451
    %v453 = vpop.f32.mrf.mxu0
    %v454 = vadd.f32 %v365, %v453
    %455 = vdwg.mxu0
    %v456 = vmax.f32 %v377, 0.0
    %v457 = vmax.f32 %v379, 0.0
    %v458 = vmax.f32 %v382, 0.0
    %v459 = vmax.f32 %v384, 0.0
    %v460 = vmax.f32 %v387, 0.0
    %v461 = vmax.f32 %v389, 0.0
    %v462 = vmax.f32 %v392, 0.0
    %v463 = vmax.f32 %v394, 0.0
    %v464 = vmax.f32 %v397, 0.0
    %v465 = vmax.f32 %v399, 0.0
    %v466 = vmax.f32 %v402, 0.0
    %v467 = vmax.f32 %v404, 0.0
    %v468 = vmax.f32 %v407, 0.0
    %v469 = vmax.f32 %v409, 0.0
    %v470 = vmax.f32 %v412, 0.0
    %v471 = vmax.f32 %v414, 0.0
    %v472 = vmax.f32 %v417, 0.0
    %v473 = vmax.f32 %v419, 0.0
    %v474 = vmax.f32 %v422, 0.0
    %v475 = vmax.f32 %v424, 0.0
    %v476 = vmax.f32 %v427, 0.0
    %v477 = vmax.f32 %v429, 0.0
    %v478 = vmax.f32 %v432, 0.0
    %v479 = vmax.f32 %v434, 0.0
    %v480 = vmax.f32 %v437, 0.0
    %v481 = vmax.f32 %v439, 0.0
    %v482 = vmax.f32 %v442, 0.0
    %v483 = vmax.f32 %v444, 0.0
    %v484 = vmax.f32 %v447, 0.0
    %v485 = vmax.f32 %v449, 0.0
    %v486 = vmax.f32 %v452, 0.0
    %v487 = vmax.f32 %v454, 0.0
    %v488 = vpack.c.bf16 %v457, %v456
    %v489 = vpack.c.bf16 %v459, %v458
    %v490 = vpack.c.bf16 %v461, %v460
    %v491 = vpack.c.bf16 %v463, %v462
    %v492 = vpack.c.bf16 %v465, %v464
    %v493 = vpack.c.bf16 %v467, %v466
    %v494 = vpack.c.bf16 %v469, %v468
    %v495 = vpack.c.bf16 %v471, %v470
    %v496 = vpack.c.bf16 %v473, %v472
    %v497 = vpack.c.bf16 %v475, %v474
    %v498 = vpack.c.bf16 %v477, %v476
    %v499 = vpack.c.bf16 %v479, %v478
    %v500 = vpack.c.bf16 %v481, %v480
    %v501 = vpack.c.bf16 %v483, %v482
    %v502 = vpack.c.bf16 %v485, %v484
    %v503 = vpack.c.bf16 %v487, %v486
    %v504 = vld [vmem:[%s3] sm:$0xf]
    %v505 = vld [vmem:[%s3 + $0x4] sm:$0xf]
    %v506 = vld [vmem:[%s3 + $0x8] sm:$0xf]
    %v507 = vld [vmem:[%s3 + $0xc] sm:$0xf]
    %v508 = vld [vmem:[%s3 + $0x10] sm:$0xf]
    %v509 = vld [vmem:[%s3 + $0x14] sm:$0xf]
    %v510 = vld [vmem:[%s3 + $0x18] sm:$0xf]
    %v511 = vld [vmem:[%s3 + $0x1c] sm:$0xf]
    %v512 = vld [vmem:[%s3 + $0x20] sm:$0xf]
    %v513 = vld [vmem:[%s3 + $0x24] sm:$0xf]
    %v514 = vld [vmem:[%s3 + $0x28] sm:$0xf]
    %v515 = vld [vmem:[%s3 + $0x2c] sm:$0xf]
    %v516 = vld [vmem:[%s3 + $0x30] sm:$0xf]
    %v517 = vld [vmem:[%s3 + $0x34] sm:$0xf]
    %v518 = vld [vmem:[%s3 + $0x38] sm:$0xf]
    %v519 = vld [vmem:[%s3 + $0x3c] sm:$0xf]
    %v520 = vld [vmem:[%s4] sm:$0x1]
    %v522 = vperm.slane %v520, 0
    %v540 = vunpack.c.l.b16 %v504
    %v541 = vunpack.c.l.b16 %v505
    %v542 = vunpack.c.l.b16 %v506
    %v543 = vunpack.c.l.b16 %v507
    %v544 = vunpack.c.l.b16 %v508
    %v545 = vunpack.c.l.b16 %v509
    %v546 = vunpack.c.l.b16 %v510
    %v547 = vunpack.c.l.b16 %v511
    %v548 = vunpack.c.l.b16 %v512
    %v549 = vunpack.c.l.b16 %v513
    %v550 = vunpack.c.l.b16 %v514
    %v551 = vunpack.c.l.b16 %v515
    %v552 = vunpack.c.l.b16 %v516
    %v553 = vunpack.c.l.b16 %v517
    %v554 = vunpack.c.l.b16 %v518
    %v555 = vunpack.c.l.b16 %v519
    %v556 = vpack.c.b16 %v541, %v540
    %v557 = vpack.c.b16 %v543, %v542
    %v558 = vpack.c.b16 %v545, %v544
    %v559 = vpack.c.b16 %v547, %v546
    %v560 = vpack.c.b16 %v549, %v548
    %v561 = vpack.c.b16 %v551, %v550
    %v562 = vpack.c.b16 %v553, %v552
    %v563 = vpack.c.b16 %v555, %v554
    %572 = vmatpush.bf16.msra.mxu0 %v563
    %573 = vmatpush.bf16.msra.mxu0 %v562
    %574 = vmatpush.bf16.msra.mxu0 %v561
    %575 = vmatpush.bf16.msra.mxu0 %v560
    %576 = vmatpush.bf16.msra.mxu0 %v559
    %577 = vmatpush.bf16.msra.mxu0 %v558
    %578 = vmatpush.bf16.msra.mxu0 %v557
    %579 = vmatpush.bf16.msra.mxu0 %v556
    %580 = vmatmul.bf16.gmra.mxu0 %v488
    %v581 = vpop.f32.mrf.mxu0
    %v582 = vadd.f32 %v522, %v581
    %v583 = vpop.f32.mrf.mxu0
    %v584 = vadd.f32 %v522, %v583
    %585 = vmatmul.bf16.gmra.mxu0 %v489
    %v586 = vpop.f32.mrf.mxu0
    %v587 = vadd.f32 %v522, %v586
    %v588 = vpop.f32.mrf.mxu0
    %v589 = vadd.f32 %v522, %v588
    %590 = vmatmul.bf16.gmra.mxu0 %v490
    %v591 = vpop.f32.mrf.mxu0
    %v592 = vadd.f32 %v522, %v591
    %v593 = vpop.f32.mrf.mxu0
    %v594 = vadd.f32 %v522, %v593
    %595 = vmatmul.bf16.gmra.mxu0 %v491
    %v596 = vpop.f32.mrf.mxu0
    %v597 = vadd.f32 %v522, %v596
    %v598 = vpop.f32.mrf.mxu0
    %v599 = vadd.f32 %v522, %v598
    %600 = vmatmul.bf16.gmra.mxu0 %v492
    %v601 = vpop.f32.mrf.mxu0
    %v602 = vadd.f32 %v522, %v601
    %v603 = vpop.f32.mrf.mxu0
    %v604 = vadd.f32 %v522, %v603
    %605 = vmatmul.bf16.gmra.mxu0 %v493
    %v606 = vpop.f32.mrf.mxu0
    %v607 = vadd.f32 %v522, %v606
    %v608 = vpop.f32.mrf.mxu0
    %v609 = vadd.f32 %v522, %v608
    %610 = vmatmul.bf16.gmra.mxu0 %v494
    %v611 = vpop.f32.mrf.mxu0
    %v612 = vadd.f32 %v522, %v611
    %v613 = vpop.f32.mrf.mxu0
    %v614 = vadd.f32 %v522, %v613
    %615 = vmatmul.bf16.gmra.mxu0 %v495
    %v616 = vpop.f32.mrf.mxu0
    %v617 = vadd.f32 %v522, %v616
    %v618 = vpop.f32.mrf.mxu0
    %v619 = vadd.f32 %v522, %v618
    %620 = vmatmul.bf16.gmra.mxu0 %v496
    %v621 = vpop.f32.mrf.mxu0
    %v622 = vadd.f32 %v522, %v621
    %v623 = vpop.f32.mrf.mxu0
    %v624 = vadd.f32 %v522, %v623
    %625 = vmatmul.bf16.gmra.mxu0 %v497
    %v626 = vpop.f32.mrf.mxu0
    %v627 = vadd.f32 %v522, %v626
    %v628 = vpop.f32.mrf.mxu0
    %v629 = vadd.f32 %v522, %v628
    %630 = vmatmul.bf16.gmra.mxu0 %v498
    %v631 = vpop.f32.mrf.mxu0
    %v632 = vadd.f32 %v522, %v631
    %v633 = vpop.f32.mrf.mxu0
    %v634 = vadd.f32 %v522, %v633
    %635 = vmatmul.bf16.gmra.mxu0 %v499
    %v636 = vpop.f32.mrf.mxu0
    %v637 = vadd.f32 %v522, %v636
    %v638 = vpop.f32.mrf.mxu0
    %v639 = vadd.f32 %v522, %v638
    %640 = vmatmul.bf16.gmra.mxu0 %v500
    %v641 = vpop.f32.mrf.mxu0
    %v642 = vadd.f32 %v522, %v641
    %v643 = vpop.f32.mrf.mxu0
    %v644 = vadd.f32 %v522, %v643
    %645 = vmatmul.bf16.gmra.mxu0 %v501
    %v646 = vpop.f32.mrf.mxu0
    %v647 = vadd.f32 %v522, %v646
    %v648 = vpop.f32.mrf.mxu0
    %v649 = vadd.f32 %v522, %v648
    %650 = vmatmul.bf16.gmra.mxu0 %v502
    %v651 = vpop.f32.mrf.mxu0
    %v652 = vadd.f32 %v522, %v651
    %v653 = vpop.f32.mrf.mxu0
    %v654 = vadd.f32 %v522, %v653
    %655 = vmatmul.bf16.gmra.mxu0 %v503
    %v656 = vpop.f32.mrf.mxu0
    %v657 = vadd.f32 %v522, %v656
    %v658 = vpop.f32.mrf.mxu0
    %v659 = vadd.f32 %v522, %v658
    %660 = vdwg.mxu0
    %v661 = vmax.f32 %v582, 0.0
    %v662 = vmax.f32 %v584, 0.0
    %v663 = vmax.f32 %v587, 0.0
    %v664 = vmax.f32 %v589, 0.0
    %v665 = vmax.f32 %v592, 0.0
    %v666 = vmax.f32 %v594, 0.0
    %v667 = vmax.f32 %v597, 0.0
    %v668 = vmax.f32 %v599, 0.0
    %v669 = vmax.f32 %v602, 0.0
    %v670 = vmax.f32 %v604, 0.0
    %v671 = vmax.f32 %v607, 0.0
    %v672 = vmax.f32 %v609, 0.0
    %v673 = vmax.f32 %v612, 0.0
    %v674 = vmax.f32 %v614, 0.0
    %v675 = vmax.f32 %v617, 0.0
    %v676 = vmax.f32 %v619, 0.0
    %v677 = vmax.f32 %v622, 0.0
    %v678 = vmax.f32 %v624, 0.0
    %v679 = vmax.f32 %v627, 0.0
    %v680 = vmax.f32 %v629, 0.0
    %v681 = vmax.f32 %v632, 0.0
    %v682 = vmax.f32 %v634, 0.0
    %v683 = vmax.f32 %v637, 0.0
    %v684 = vmax.f32 %v639, 0.0
    %v685 = vmax.f32 %v642, 0.0
    %v686 = vmax.f32 %v644, 0.0
    %v687 = vmax.f32 %v647, 0.0
    %v688 = vmax.f32 %v649, 0.0
    %v689 = vmax.f32 %v652, 0.0
    %v690 = vmax.f32 %v654, 0.0
    %v691 = vmax.f32 %v657, 0.0
    %v692 = vmax.f32 %v659, 0.0
    %v693 = vpack.c.bf16 %v662, %v661
    %v694 = vpack.c.bf16 %v664, %v663
    %v695 = vpack.c.bf16 %v666, %v665
    %v696 = vpack.c.bf16 %v668, %v667
    %v697 = vpack.c.bf16 %v670, %v669
    %v698 = vpack.c.bf16 %v672, %v671
    %v699 = vpack.c.bf16 %v674, %v673
    %v700 = vpack.c.bf16 %v676, %v675
    %v701 = vpack.c.bf16 %v678, %v677
    %v702 = vpack.c.bf16 %v680, %v679
    %v703 = vpack.c.bf16 %v682, %v681
    %v704 = vpack.c.bf16 %v684, %v683
    %v705 = vpack.c.bf16 %v686, %v685
    %v706 = vpack.c.bf16 %v688, %v687
    %v707 = vpack.c.bf16 %v690, %v689
    %v708 = vpack.c.bf16 %v692, %v691
    %v709 = vld [vmem:[%s5] sm:$0xf]
    %v710 = vld [vmem:[%s5 + $0x4] sm:$0xf]
    %v711 = vld [vmem:[%s5 + $0x8] sm:$0xf]
    %v712 = vld [vmem:[%s5 + $0xc] sm:$0xf]
    %v713 = vld [vmem:[%s5 + $0x10] sm:$0xf]
    %v714 = vld [vmem:[%s5 + $0x14] sm:$0xf]
    %v715 = vld [vmem:[%s5 + $0x18] sm:$0xf]
    %v716 = vld [vmem:[%s5 + $0x1c] sm:$0xf]
    %v717 = vld [vmem:[%s6] sm:$0x1]
    %v719 = vperm.slane %v717, 0
    %v729 = vunpack.c.l.b16 %v709
    %v730 = vunpack.c.l.b16 %v710
    %v731 = vunpack.c.l.b16 %v711
    %v732 = vunpack.c.l.b16 %v712
    %v733 = vunpack.c.l.b16 %v713
    %v734 = vunpack.c.l.b16 %v714
    %v735 = vunpack.c.l.b16 %v715
    %v736 = vunpack.c.l.b16 %v716
    %v737 = vpack.c.b16 %v730, %v729
    %v738 = vpack.c.b16 %v732, %v731
    %v739 = vpack.c.b16 %v734, %v733
    %v740 = vpack.c.b16 %v736, %v735
    %vm745 = vcmask 523264
    %v747 = vsel %vm745, %v693, 0
    %v750 = vsel %vm745, %v694, 0
    %v753 = vsel %vm745, %v695, 0
    %v756 = vsel %vm745, %v696, 0
    %v759 = vsel %vm745, %v697, 0
    %v762 = vsel %vm745, %v698, 0
    %v765 = vsel %vm745, %v699, 0
    %v768 = vsel %vm745, %v700, 0
    %v771 = vsel %vm745, %v701, 0
    %v774 = vsel %vm745, %v702, 0
    %v777 = vsel %vm745, %v703, 0
    %v780 = vsel %vm745, %v704, 0
    %v783 = vsel %vm745, %v705, 0
    %v786 = vsel %vm745, %v706, 0
    %v789 = vsel %vm745, %v707, 0
    %v792 = vsel %vm745, %v708, 0
    %794 = vmatpush.bf16.msra.mxu0 0
    %795 = vmatpush.bf16.msra.mxu0 0
    %796 = vmatpush.bf16.msra.mxu0 0
    %797 = vmatpush.bf16.msra.mxu0 0
    %798 = vmatpush.bf16.msra.mxu0 %v740
    %799 = vmatpush.bf16.msra.mxu0 %v739
    %800 = vmatpush.bf16.msra.mxu0 %v738
    %801 = vmatpush.bf16.msra.mxu0 %v737
    %802 = vmatmul.bf16.gmra.mxu0 %v747
    %v803 = vpop.f32.mrf.mxu0
    %v804 = vadd.f32 %v719, %v803
    %v805 = vpop.f32.mrf.mxu0
    %v806 = vadd.f32 %v719, %v805
    %807 = vmatmul.bf16.gmra.mxu0 %v750
    %v808 = vpop.f32.mrf.mxu0
    %v809 = vadd.f32 %v719, %v808
    %v810 = vpop.f32.mrf.mxu0
    %v811 = vadd.f32 %v719, %v810
    %812 = vmatmul.bf16.gmra.mxu0 %v753
    %v813 = vpop.f32.mrf.mxu0
    %v814 = vadd.f32 %v719, %v813
    %v815 = vpop.f32.mrf.mxu0
    %v816 = vadd.f32 %v719, %v815
    %817 = vmatmul.bf16.gmra.mxu0 %v756
    %v818 = vpop.f32.mrf.mxu0
    %v819 = vadd.f32 %v719, %v818
    %v820 = vpop.f32.mrf.mxu0
    %v821 = vadd.f32 %v719, %v820
    %822 = vmatmul.bf16.gmra.mxu0 %v759
    %v823 = vpop.f32.mrf.mxu0
    %v824 = vadd.f32 %v719, %v823
    %v825 = vpop.f32.mrf.mxu0
    %v826 = vadd.f32 %v719, %v825
    %827 = vmatmul.bf16.gmra.mxu0 %v762
    %v828 = vpop.f32.mrf.mxu0
    %v829 = vadd.f32 %v719, %v828
    %v830 = vpop.f32.mrf.mxu0
    %v831 = vadd.f32 %v719, %v830
    %832 = vmatmul.bf16.gmra.mxu0 %v765
    %v833 = vpop.f32.mrf.mxu0
    %v834 = vadd.f32 %v719, %v833
    %v835 = vpop.f32.mrf.mxu0
    %v836 = vadd.f32 %v719, %v835
    %837 = vmatmul.bf16.gmra.mxu0 %v768
    %v838 = vpop.f32.mrf.mxu0
    %v839 = vadd.f32 %v719, %v838
    %v840 = vpop.f32.mrf.mxu0
    %v841 = vadd.f32 %v719, %v840
    %842 = vmatmul.bf16.gmra.mxu0 %v771
    %v843 = vpop.f32.mrf.mxu0
    %v844 = vadd.f32 %v719, %v843
    %v845 = vpop.f32.mrf.mxu0
    %v846 = vadd.f32 %v719, %v845
    %847 = vmatmul.bf16.gmra.mxu0 %v774
    %v848 = vpop.f32.mrf.mxu0
    %v849 = vadd.f32 %v719, %v848
    %v850 = vpop.f32.mrf.mxu0
    %v851 = vadd.f32 %v719, %v850
    %852 = vmatmul.bf16.gmra.mxu0 %v777
    %v853 = vpop.f32.mrf.mxu0
    %v854 = vadd.f32 %v719, %v853
    %v855 = vpop.f32.mrf.mxu0
    %v856 = vadd.f32 %v719, %v855
    %857 = vmatmul.bf16.gmra.mxu0 %v780
    %v858 = vpop.f32.mrf.mxu0
    %v859 = vadd.f32 %v719, %v858
    %v860 = vpop.f32.mrf.mxu0
    %v861 = vadd.f32 %v719, %v860
    %862 = vmatmul.bf16.gmra.mxu0 %v783
    %v863 = vpop.f32.mrf.mxu0
    %v864 = vadd.f32 %v719, %v863
    %v865 = vpop.f32.mrf.mxu0
    %v866 = vadd.f32 %v719, %v865
    %867 = vmatmul.bf16.gmra.mxu0 %v786
    %v868 = vpop.f32.mrf.mxu0
    %v869 = vadd.f32 %v719, %v868
    %v870 = vpop.f32.mrf.mxu0
    %v871 = vadd.f32 %v719, %v870
    %872 = vmatmul.bf16.gmra.mxu0 %v789
    %v873 = vpop.f32.mrf.mxu0
    %v874 = vadd.f32 %v719, %v873
    %v875 = vpop.f32.mrf.mxu0
    %v876 = vadd.f32 %v719, %v875
    %877 = vmatmul.bf16.gmra.mxu0 %v792
    %v878 = vpop.f32.mrf.mxu0
    %v879 = vadd.f32 %v719, %v878
    %v880 = vpop.f32.mrf.mxu0
    %v881 = vadd.f32 %v719, %v880
    %882 = vdwg.mxu0
    %v883 = vmax.f32 %v804, 0.0
    %v884 = vmax.f32 %v806, 0.0
    %v885 = vmax.f32 %v809, 0.0
    %v886 = vmax.f32 %v811, 0.0
    %v887 = vmax.f32 %v814, 0.0
    %v888 = vmax.f32 %v816, 0.0
    %v889 = vmax.f32 %v819, 0.0
    %v890 = vmax.f32 %v821, 0.0
    %v891 = vmax.f32 %v824, 0.0
    %v892 = vmax.f32 %v826, 0.0
    %v893 = vmax.f32 %v829, 0.0
    %v894 = vmax.f32 %v831, 0.0
    %v895 = vmax.f32 %v834, 0.0
    %v896 = vmax.f32 %v836, 0.0
    %v897 = vmax.f32 %v839, 0.0
    %v898 = vmax.f32 %v841, 0.0
    %v899 = vmax.f32 %v844, 0.0
    %v900 = vmax.f32 %v846, 0.0
    %v901 = vmax.f32 %v849, 0.0
    %v902 = vmax.f32 %v851, 0.0
    %v903 = vmax.f32 %v854, 0.0
    %v904 = vmax.f32 %v856, 0.0
    %v905 = vmax.f32 %v859, 0.0
    %v906 = vmax.f32 %v861, 0.0
    %v907 = vmax.f32 %v864, 0.0
    %v908 = vmax.f32 %v866, 0.0
    %v909 = vmax.f32 %v869, 0.0
    %v910 = vmax.f32 %v871, 0.0
    %v911 = vmax.f32 %v874, 0.0
    %v912 = vmax.f32 %v876, 0.0
    %v913 = vmax.f32 %v879, 0.0
    %v914 = vmax.f32 %v881, 0.0
    %v915 = vpack.c.bf16 %v884, %v883
    %v916 = vpack.c.bf16 %v886, %v885
    %v917 = vpack.c.bf16 %v888, %v887
    %v918 = vpack.c.bf16 %v890, %v889
    %v919 = vpack.c.bf16 %v892, %v891
    %v920 = vpack.c.bf16 %v894, %v893
    %v921 = vpack.c.bf16 %v896, %v895
    %v922 = vpack.c.bf16 %v898, %v897
    %v923 = vpack.c.bf16 %v900, %v899
    %v924 = vpack.c.bf16 %v902, %v901
    %v925 = vpack.c.bf16 %v904, %v903
    %v926 = vpack.c.bf16 %v906, %v905
    %v927 = vpack.c.bf16 %v908, %v907
    %v928 = vpack.c.bf16 %v910, %v909
    %v929 = vpack.c.bf16 %v912, %v911
    %v930 = vpack.c.bf16 %v914, %v913
    %v931 = vld [vmem:[%s7] sm:$0xf]
    %v932 = vld [vmem:[%s7 + $0x4] sm:$0xf]
    %v933 = vld [vmem:[%s7 + $0x8] sm:$0xf]
    %v934 = vld [vmem:[%s7 + $0xc] sm:$0xf]
    %v935 = vld [vmem:[%s8] sm:$0x1]
    %v937 = vperm.slane %v935, 0
    %v943 = vunpack.c.l.b16 %v931
    %v944 = vunpack.c.l.b16 %v932
    %v945 = vunpack.c.l.b16 %v933
    %v946 = vunpack.c.l.b16 %v934
    %v947 = vpack.c.b16 %v944, %v943
    %v948 = vpack.c.b16 %v946, %v945
    %vm951 = vcmask 261120
    %v953 = vsel %vm951, %v915, 0
    %v956 = vsel %vm951, %v916, 0
    %v959 = vsel %vm951, %v917, 0
    %v962 = vsel %vm951, %v918, 0
    %v965 = vsel %vm951, %v919, 0
    %v968 = vsel %vm951, %v920, 0
    %v971 = vsel %vm951, %v921, 0
    %v974 = vsel %vm951, %v922, 0
    %v977 = vsel %vm951, %v923, 0
    %v980 = vsel %vm951, %v924, 0
    %v983 = vsel %vm951, %v925, 0
    %v986 = vsel %vm951, %v926, 0
    %v989 = vsel %vm951, %v927, 0
    %v992 = vsel %vm951, %v928, 0
    %v995 = vsel %vm951, %v929, 0
    %v998 = vsel %vm951, %v930, 0
    %1000 = vmatpush.bf16.msra.mxu0 0
    %1001 = vmatpush.bf16.msra.mxu0 0
    %1002 = vmatpush.bf16.msra.mxu0 0
    %1003 = vmatpush.bf16.msra.mxu0 0
    %1004 = vmatpush.bf16.msra.mxu0 0
    %1005 = vmatpush.bf16.msra.mxu0 0
    %1006 = vmatpush.bf16.msra.mxu0 %v948
    %1007 = vmatpush.bf16.msra.mxu0 %v947
    %1008 = vmatmul.bf16.gmra.mxu0 %v953
    %v1009 = vpop.f32.mrf.mxu0
    %v1010 = vadd.f32 %v937, %v1009
    %v1011 = vpop.f32.mrf.mxu0
    %v1012 = vadd.f32 %v937, %v1011
    %1013 = vmatmul.bf16.gmra.mxu0 %v956
    %v1014 = vpop.f32.mrf.mxu0
    %v1015 = vadd.f32 %v937, %v1014
    %v1016 = vpop.f32.mrf.mxu0
    %v1017 = vadd.f32 %v937, %v1016
    %1018 = vmatmul.bf16.gmra.mxu0 %v959
    %v1019 = vpop.f32.mrf.mxu0
    %v1020 = vadd.f32 %v937, %v1019
    %v1021 = vpop.f32.mrf.mxu0
    %v1022 = vadd.f32 %v937, %v1021
    %1023 = vmatmul.bf16.gmra.mxu0 %v962
    %v1024 = vpop.f32.mrf.mxu0
    %v1025 = vadd.f32 %v937, %v1024
    %v1026 = vpop.f32.mrf.mxu0
    %v1027 = vadd.f32 %v937, %v1026
    %1028 = vmatmul.bf16.gmra.mxu0 %v965
    %v1029 = vpop.f32.mrf.mxu0
    %v1030 = vadd.f32 %v937, %v1029
    %v1031 = vpop.f32.mrf.mxu0
    %v1032 = vadd.f32 %v937, %v1031
    %1033 = vmatmul.bf16.gmra.mxu0 %v968
    %v1034 = vpop.f32.mrf.mxu0
    %v1035 = vadd.f32 %v937, %v1034
    %v1036 = vpop.f32.mrf.mxu0
    %v1037 = vadd.f32 %v937, %v1036
    %1038 = vmatmul.bf16.gmra.mxu0 %v971
    %v1039 = vpop.f32.mrf.mxu0
    %v1040 = vadd.f32 %v937, %v1039
    %v1041 = vpop.f32.mrf.mxu0
    %v1042 = vadd.f32 %v937, %v1041
    %1043 = vmatmul.bf16.gmra.mxu0 %v974
    %v1044 = vpop.f32.mrf.mxu0
    %v1045 = vadd.f32 %v937, %v1044
    %v1046 = vpop.f32.mrf.mxu0
    %v1047 = vadd.f32 %v937, %v1046
    %1048 = vmatmul.bf16.gmra.mxu0 %v977
    %v1049 = vpop.f32.mrf.mxu0
    %v1050 = vadd.f32 %v937, %v1049
    %v1051 = vpop.f32.mrf.mxu0
    %v1052 = vadd.f32 %v937, %v1051
    %1053 = vmatmul.bf16.gmra.mxu0 %v980
    %v1054 = vpop.f32.mrf.mxu0
    %v1055 = vadd.f32 %v937, %v1054
    %v1056 = vpop.f32.mrf.mxu0
    %v1057 = vadd.f32 %v937, %v1056
    %1058 = vmatmul.bf16.gmra.mxu0 %v983
    %v1059 = vpop.f32.mrf.mxu0
    %v1060 = vadd.f32 %v937, %v1059
    %v1061 = vpop.f32.mrf.mxu0
    %v1062 = vadd.f32 %v937, %v1061
    %1063 = vmatmul.bf16.gmra.mxu0 %v986
    %v1064 = vpop.f32.mrf.mxu0
    %v1065 = vadd.f32 %v937, %v1064
    %v1066 = vpop.f32.mrf.mxu0
    %v1067 = vadd.f32 %v937, %v1066
    %1068 = vmatmul.bf16.gmra.mxu0 %v989
    %v1069 = vpop.f32.mrf.mxu0
    %v1070 = vadd.f32 %v937, %v1069
    %v1071 = vpop.f32.mrf.mxu0
    %v1072 = vadd.f32 %v937, %v1071
    %1073 = vmatmul.bf16.gmra.mxu0 %v992
    %v1074 = vpop.f32.mrf.mxu0
    %v1075 = vadd.f32 %v937, %v1074
    %v1076 = vpop.f32.mrf.mxu0
    %v1077 = vadd.f32 %v937, %v1076
    %1078 = vmatmul.bf16.gmra.mxu0 %v995
    %v1079 = vpop.f32.mrf.mxu0
    %v1080 = vadd.f32 %v937, %v1079
    %v1081 = vpop.f32.mrf.mxu0
    %v1082 = vadd.f32 %v937, %v1081
    %1083 = vmatmul.bf16.gmra.mxu0 %v998
    %v1084 = vpop.f32.mrf.mxu0
    %v1085 = vadd.f32 %v937, %v1084
    %v1086 = vpop.f32.mrf.mxu0
    %v1087 = vadd.f32 %v937, %v1086
    %1088 = vdwg.mxu0
    %1089 = vst [vmem:[#allocation5] sm:$0xff] %v1010
    %1090 = vst [vmem:[#allocation5 + $0x8] sm:$0xff] %v1012
    %1091 = vst [vmem:[#allocation5 + $0x10] sm:$0xff] %v1015
    %1092 = vst [vmem:[#allocation5 + $0x18] sm:$0xff] %v1017
    %1093 = vst [vmem:[#allocation5 + $0x20] sm:$0xff] %v1020
    %1094 = vst [vmem:[#allocation5 + $0x28] sm:$0xff] %v1022
    %1095 = vst [vmem:[#allocation5 + $0x30] sm:$0xff] %v1025
    %1096 = vst [vmem:[#allocation5 + $0x38] sm:$0xff] %v1027
    %1097 = vst [vmem:[#allocation5 + $0x40] sm:$0xff] %v1030
    %1098 = vst [vmem:[#allocation5 + $0x48] sm:$0xff] %v1032
    %1099 = vst [vmem:[#allocation5 + $0x50] sm:$0xff] %v1035
    %1100 = vst [vmem:[#allocation5 + $0x58] sm:$0xff] %v1037
    %1101 = vst [vmem:[#allocation5 + $0x60] sm:$0xff] %v1040
    %1102 = vst [vmem:[#allocation5 + $0x68] sm:$0xff] %v1042
    %1103 = vst [vmem:[#allocation5 + $0x70] sm:$0xff] %v1045
    %1104 = vst [vmem:[#allocation5 + $0x78] sm:$0xff] %v1047
    %1105 = vst [vmem:[#allocation5 + $0x80] sm:$0xff] %v1050
    %1106 = vst [vmem:[#allocation5 + $0x88] sm:$0xff] %v1052
    %1107 = vst [vmem:[#allocation5 + $0x90] sm:$0xff] %v1055
    %1108 = vst [vmem:[#allocation5 + $0x98] sm:$0xff] %v1057
    %1109 = vst [vmem:[#allocation5 + $0xa0] sm:$0xff] %v1060
    %1110 = vst [vmem:[#allocation5 + $0xa8] sm:$0xff] %v1062
    %1111 = vst [vmem:[#allocation5 + $0xb0] sm:$0xff] %v1065
    %1112 = vst [vmem:[#allocation5 + $0xb8] sm:$0xff] %v1067
    %1113 = vst [vmem:[#allocation5 + $0xc0] sm:$0xff] %v1070
    %1114 = vst [vmem:[#allocation5 + $0xc8] sm:$0xff] %v1072
    %1115 = vst [vmem:[#allocation5 + $0xd0] sm:$0xff] %v1075
    %1116 = vst [vmem:[#allocation5 + $0xd8] sm:$0xff] %v1077
    %1117 = vst [vmem:[#allocation5 + $0xe0] sm:$0xff] %v1080
    %1118 = vst [vmem:[#allocation5 + $0xe8] sm:$0xff] %v1082
    %1119 = vst [vmem:[#allocation5 + $0xf0] sm:$0xff] %v1085
    %1120 = vst [vmem:[#allocation5 + $0xf8] sm:$0xff] %v1087
    // Predicated region
    $region42: #{tpu_custom_call.1} parent=1 // pred_check
      _
    $region43: #{tpu_custom_call.1} parent=1 // pred_check_branch
      %1122 = sbr.rel (0) target = $region45
    $region44: #{tpu_custom_call.1} parent=1 // pred_region
      %1124 = vsyncadd [#allocation4], 0
      %s1125 = sshll.u32 [#allocation5], 4
      %s1126 = int_to_ptr.vmem [resolvable:$true] %s1125
      %s1127 = sshll.u32 %s9, 4
      %s1128 = int_to_ptr.hbm [resolvable:$true] %s1127
      %1133 = dma.vmem_to_hbm [thread:$0]  %s1126, 4096, %s1128, [#allocation4], 128, 128, 8
    $region45: #{tpu_custom_call.1} parent=1 // pred_fallthru
      _
    // Predicated region
    $region46: #{tpu_custom_call.1} parent=1 // pred_check
      _
    $region47: #{tpu_custom_call.1} parent=1 // pred_check_branch
      %1135 = sbr.rel (0) target = $region49
    $region48: #{tpu_custom_call.1} parent=1 // pred_region
      %1137 = dma.done [#allocation4], 4096
    $region49: #{tpu_custom_call.1} parent=1 // pred_fallthru
      _
    %1138 = vsyncpa [#allocation3], 1
    %1139 = vsyncpa [#allocation4], 1

</llo_original>
